<compile_context>
chip_gen: v6e
topology: v6e:2x2x1
jax: 0.10.0
libtpu: 0.0.40
codegen_flags: <defaults>
</compile_context>

<pallas_src>
import functools

import jax
import jax.numpy as jnp
from jax.experimental import pallas as pl
from jax.experimental.pallas import tpu as pltpu

HIDDEN = (32, 64, 64)
BN_EPS = 1e-5


def _round_up(x, m):
    return pl.cdiv(x, m) * m


def act_preprocess_kernel(x_ref, w1_ref, b1_ref, w2_ref, b2_ref,
                          w3_ref, b3_ref, w4_ref, o_ref):
    # Each stage: dot (MXU, f32 accumulation) -> +bias -> relu.
    # BatchNorm has already been folded into the weights / biases.
    h = jnp.dot(x_ref[...].astype(w1_ref.dtype), w1_ref[...],
                preferred_element_type=jnp.float32)
    h = jnp.maximum(h + b1_ref[...], 0.0)

    h = jnp.dot(h.astype(w2_ref.dtype), w2_ref[...],
                preferred_element_type=jnp.float32)
    h = jnp.maximum(h + b2_ref[...], 0.0)

    h = jnp.dot(h.astype(w3_ref.dtype), w3_ref[...],
                preferred_element_type=jnp.float32)
    h = jnp.maximum(h + b3_ref[...], 0.0)

    h = jnp.dot(h.astype(w4_ref.dtype), w4_ref[...],
                preferred_element_type=jnp.float32)
    # Final Dropout is identity in eval mode.
    o_ref[...] = h.astype(o_ref.dtype)


@functools.partial(jax.jit, static_argnames=("block_b", "compute_dtype"))
def act_preprocess_net(act, params, block_b=512, compute_dtype=jnp.bfloat16):
    """act: (B, in_features) float32. Returns (intermediate_rep, None)."""
    w1, bn1, w2, bn2, w3, bn3, w4 = params
    B, Fin = act.shape
    Fout = w4.shape[1]

    # One-time O(weights) fold of eval-mode BatchNorm into the linear layers.
    def fold(w, bn):
        scale = bn[0] * jax.lax.rsqrt(bn[3] + BN_EPS)          # gamma / sqrt(var+eps)
        shift = bn[1] - bn[2] * scale                          # beta - mean*scale
        return (w * scale[None, :]).astype(compute_dtype), shift[None, :].astype(jnp.float32)

    w1f, b1 = fold(w1, bn1)
    w2f, b2 = fold(w2, bn2)
    w3f, b3 = fold(w3, bn3)

    # Lane-dense output: pad final weight columns to a multiple of 128 so the
    # output block is written with unmasked full-width stores.
    Fout_pad = _round_up(Fout, 128)
    w4f = jnp.pad(w4, ((0, 0), (0, Fout_pad - Fout))).astype(compute_dtype)

    # Batch tiling: clamp the tile to the (sublane-rounded) batch, then pad B
    # up to a tile multiple so any batch size works. Padded rows are sliced off.
    # At blk=512 the live VMEM (x + padded-out double-buffers) is ~1 MiB, so
    # blk can be raised to several thousand on v5e/v6e/v7x without touching
    # vmem_limit_bytes; the weights themselves are <40 KB and stay resident.
    blk = max(8, min(block_b, _round_up(B, 8)))
    B_pad = _round_up(B, blk)
    x = act if B_pad == B else jnp.pad(act, ((0, B_pad - B), (0, 0)))

    def resident(shape):  # whole array, same block every grid step (stays in VMEM)
        return pl.BlockSpec(shape, lambda i: (0, 0))

    out = pl.pallas_call(
        act_preprocess_kernel,
        out_shape=jax.ShapeDtypeStruct((B_pad, Fout_pad), jnp.float32),
        grid_spec=pltpu.PrefetchScalarGridSpec(
            num_scalar_prefetch=0,
            grid=(B_pad // blk,),
            in_specs=[
                pl.BlockSpec((blk, Fin), lambda i: (i, 0)),   # x tiled over batch
                resident(w1f.shape), resident(b1.shape),
                resident(w2f.shape), resident(b2.shape),
                resident(w3f.shape), resident(b3.shape),
                resident(w4f.shape),
            ],
            out_specs=pl.BlockSpec((blk, Fout_pad), lambda i: (i, 0)),
        ),
        compiler_params=pltpu.CompilerParams(
            # Batch tiles are independent -> shard across TensorCores (v7x megacore).
            dimension_semantics=("parallel",)),
    )(x, w1f, b1, w2f, b2, w3f, b3, w4f)

    return out[:B, :Fout], None


def init_params(key, in_features, intermed_rep_size):
    dims = [in_features, *HIDDEN, intermed_rep_size]
    keys = jax.random.split(key, 2 * (len(dims) - 1))
    params = []
    for li in range(len(dims) - 1):
        fan_in, fan_out = dims[li], dims[li + 1]
        bound = 1.0 / jnp.sqrt(jnp.float32(fan_in))
        # stored (in, out): forward is x @ W  (== x @ torch_weight.T)
        w = jax.random.uniform(keys[2 * li], (fan_in, fan_out),
                               minval=-bound, maxval=bound, dtype=jnp.float32)
        params.append(w)
        if li < len(dims) - 2:  # BN after every hidden linear, not the last one
            kb = jax.random.split(keys[2 * li + 1], 4)
            gamma = 1.0 + 0.1 * jax.random.normal(kb[0], (fan_out,), jnp.float32)
            beta = 0.1 * jax.random.normal(kb[1], (fan_out,), jnp.float32)
            r_mean = 0.1 * jax.random.normal(kb[2], (fan_out,), jnp.float32)
            r_var = jnp.abs(jax.random.normal(kb[3], (fan_out,), jnp.float32)) + 0.5
            params.append(jnp.stack([gamma, beta, r_mean, r_var], axis=0))  # (4, C)
    return tuple(params)


def reference_forward(act, params):
    """Faithful eval-mode reference: Linear -> BN(running stats) -> ReLU, x3; Linear."""
    w1, bn1, w2, bn2, w3, bn3, w4 = params
    h = act
    for w, bn in ((w1, bn1), (w2, bn2), (w3, bn3)):
        h = h @ w
        h = (h - bn[2]) / jnp.sqrt(bn[3] + BN_EPS) * bn[0] + bn[1]
        h = jnp.maximum(h, 0.0)
    return h @ w4


if __name__ == "__main__":
    key = jax.random.PRNGKey(0)
    k_act, k_params, k_act2 = jax.random.split(key, 3)

    single_act_shape = (6,)          # input_features = single_act_shape[0]
    intermed_rep_size = 48
    params = init_params(k_params, single_act_shape[0], intermed_rep_size)

    # Small demo batch.
    batch = 8
    act = jax.random.normal(k_act, (batch, single_act_shape[0]), dtype=jnp.float32)
    ref = reference_forward(act, params)

    # Strict numerical check with f32 matmuls (only difference vs reference is BN fold).
    out_f32, state = act_preprocess_net(act, params, compute_dtype=jnp.float32)
    out_f32 = jax.block_until_ready(out_f32)
    assert out_f32.shape == (batch, intermed_rep_size)
    assert state is None
    assert jnp.allclose(out_f32, ref, atol=1e-4, rtol=1e-4)

    # Default fast path: bf16 MXU matmuls with f32 accumulation.
    out_bf16, _ = act_preprocess_net(act, params)
    out_bf16 = jax.block_until_ready(out_bf16)
    assert out_bf16.shape == (batch, intermed_rep_size)
    assert jnp.allclose(out_bf16, ref, atol=2e-2, rtol=2e-2)

    # Ragged batch not divisible by the tile (exercises padding + multi-step grid).
    batch2 = 300
    act2 = jax.random.normal(k_act2, (batch2, single_act_shape[0]), dtype=jnp.float32)
    out2, _ = act_preprocess_net(act2, params, block_b=256)
    out2 = jax.block_until_ready(out2)
    assert out2.shape == (batch2, intermed_rep_size)
    assert jnp.allclose(out2, reference_forward(act2, params), atol=2e-2, rtol=2e-2)

    print("KERNEL_OK")
</pallas_src>

<mosaic_0001>
module attributes {stable_mosaic.version = 11 : i64} {
  func.func @act_preprocess_kernel(%arg0: i32, %arg1: memref<8x6xf32, #tpu.memory_space<vmem>>, %arg2: memref<6x32xf32, #tpu.memory_space<vmem>>, %arg3: memref<1x32xf32, #tpu.memory_space<vmem>>, %arg4: memref<32x64xf32, #tpu.memory_space<vmem>>, %arg5: memref<1x64xf32, #tpu.memory_space<vmem>>, %arg6: memref<64x64xf32, #tpu.memory_space<vmem>>, %arg7: memref<1x64xf32, #tpu.memory_space<vmem>>, %arg8: memref<64x128xf32, #tpu.memory_space<vmem>>, %arg9: memref<8x128xf32, #tpu.memory_space<vmem>>) attributes {dimension_semantics = [#tpu.dimension_semantics<parallel>], iteration_bounds = array<i64: 1>, scalar_prefetch = 0 : i64, scratch_operands = 0 : i64, tpu.core_type = #tpu.core_type<tc>, window_params = [{transform_indices = @transform_0, window_bounds = array<i64: 8, 6>}, {pipeline_mode = #tpu.pipeline_mode<synchronous>, transform_indices = @transform_1, window_bounds = array<i64: 6, 32>}, {pipeline_mode = #tpu.pipeline_mode<synchronous>, transform_indices = @transform_2, window_bounds = array<i64: 1, 32>}, {pipeline_mode = #tpu.pipeline_mode<synchronous>, transform_indices = @transform_3, window_bounds = array<i64: 32, 64>}, {pipeline_mode = #tpu.pipeline_mode<synchronous>, transform_indices = @transform_4, window_bounds = array<i64: 1, 64>}, {pipeline_mode = #tpu.pipeline_mode<synchronous>, transform_indices = @transform_5, window_bounds = array<i64: 64, 64>}, {pipeline_mode = #tpu.pipeline_mode<synchronous>, transform_indices = @transform_6, window_bounds = array<i64: 1, 64>}, {pipeline_mode = #tpu.pipeline_mode<synchronous>, transform_indices = @transform_7, window_bounds = array<i64: 64, 128>}, {transform_indices = @transform_8, window_bounds = array<i64: 8, 128>}]} {
    %c0 = arith.constant 0 : index
    %c0_0 = arith.constant 0 : index
    %0 = vector.load %arg1[%c0, %c0_0] : memref<8x6xf32, #tpu.memory_space<vmem>>, vector<8x6xf32>
    %c0_1 = arith.constant 0 : index
    %c0_2 = arith.constant 0 : index
    %1 = vector.load %arg2[%c0_1, %c0_2] : memref<6x32xf32, #tpu.memory_space<vmem>>, vector<6x32xf32>
    %cst = arith.constant dense<0.000000e+00> : vector<8x32xf32>
    %2 = tpu.matmul %0, %1, %cst {dimension_numbers = #tpu.dot_dimension_numbers<[1], [0], [0], [1], [0, 0, 1, 1], [], []>} : vector<8x6xf32>, vector<6x32xf32>, vector<8x32xf32> -> vector<8x32xf32>
    %c0_3 = arith.constant 0 : index
    %c0_4 = arith.constant 0 : index
    %3 = vector.load %arg3[%c0_3, %c0_4] : memref<1x32xf32, #tpu.memory_space<vmem>>, vector<1x32xf32>
    %4 = vector.broadcast %3 : vector<1x32xf32> to vector<8x32xf32>
    %5 = arith.addf %2, %4 : vector<8x32xf32>
    %cst_5 = arith.constant 0.000000e+00 : f32
    %6 = vector.broadcast %cst_5 : f32 to vector<8x32xf32>
    %7 = arith.maximumf %5, %6 : vector<8x32xf32>
    %c0_6 = arith.constant 0 : index
    %c0_7 = arith.constant 0 : index
    %8 = vector.load %arg4[%c0_6, %c0_7] : memref<32x64xf32, #tpu.memory_space<vmem>>, vector<32x64xf32>
    %cst_8 = arith.constant dense<0.000000e+00> : vector<8x64xf32>
    %9 = tpu.matmul %7, %8, %cst_8 {dimension_numbers = #tpu.dot_dimension_numbers<[1], [0], [0], [1], [0, 0, 1, 1], [], []>} : vector<8x32xf32>, vector<32x64xf32>, vector<8x64xf32> -> vector<8x64xf32>
    %c0_9 = arith.constant 0 : index
    %c0_10 = arith.constant 0 : index
    %10 = vector.load %arg5[%c0_9, %c0_10] : memref<1x64xf32, #tpu.memory_space<vmem>>, vector<1x64xf32>
    %11 = vector.broadcast %10 : vector<1x64xf32> to vector<8x64xf32>
    %12 = arith.addf %9, %11 : vector<8x64xf32>
    %cst_11 = arith.constant 0.000000e+00 : f32
    %13 = vector.broadcast %cst_11 : f32 to vector<8x64xf32>
    %14 = arith.maximumf %12, %13 : vector<8x64xf32>
    %c0_12 = arith.constant 0 : index
    %c0_13 = arith.constant 0 : index
    %15 = vector.load %arg6[%c0_12, %c0_13] : memref<64x64xf32, #tpu.memory_space<vmem>>, vector<64x64xf32>
    %cst_14 = arith.constant dense<0.000000e+00> : vector<8x64xf32>
    %16 = tpu.matmul %14, %15, %cst_14 {dimension_numbers = #tpu.dot_dimension_numbers<[1], [0], [0], [1], [0, 0, 1, 1], [], []>} : vector<8x64xf32>, vector<64x64xf32>, vector<8x64xf32> -> vector<8x64xf32>
    %c0_15 = arith.constant 0 : index
    %c0_16 = arith.constant 0 : index
    %17 = vector.load %arg7[%c0_15, %c0_16] : memref<1x64xf32, #tpu.memory_space<vmem>>, vector<1x64xf32>
    %18 = vector.broadcast %17 : vector<1x64xf32> to vector<8x64xf32>
    %19 = arith.addf %16, %18 : vector<8x64xf32>
    %cst_17 = arith.constant 0.000000e+00 : f32
    %20 = vector.broadcast %cst_17 : f32 to vector<8x64xf32>
    %21 = arith.maximumf %19, %20 : vector<8x64xf32>
    %c0_18 = arith.constant 0 : index
    %c0_19 = arith.constant 0 : index
    %22 = vector.load %arg8[%c0_18, %c0_19] : memref<64x128xf32, #tpu.memory_space<vmem>>, vector<64x128xf32>
    %cst_20 = arith.constant dense<0.000000e+00> : vector<8x128xf32>
    %23 = tpu.matmul %21, %22, %cst_20 {dimension_numbers = #tpu.dot_dimension_numbers<[1], [0], [0], [1], [0, 0, 1, 1], [], []>} : vector<8x64xf32>, vector<64x128xf32>, vector<8x128xf32> -> vector<8x128xf32>
    %c0_21 = arith.constant 0 : index
    %c0_22 = arith.constant 0 : index
    %24 = vector.load %arg9[%c0_21, %c0_22] : memref<8x128xf32, #tpu.memory_space<vmem>>, vector<8x128xf32>
    tpu.vector_store %arg9[%c0_21, %c0_22], %23 {strides = array<i32>} : memref<8x128xf32, #tpu.memory_space<vmem>>, vector<8x128xf32>,
    return
  }
  func.func @transform_0(%arg0: i32) -> (i32, i32) {
    %c0_i32 = arith.constant 0 : i32
    %c0_i32_0 = arith.constant 0 : i32
    return %arg0, %c0_i32 : i32, i32
  }
  func.func @transform_1(%arg0: i32) -> (i32, i32) {
    %c0_i32 = arith.constant 0 : i32
    %c0_i32_0 = arith.constant 0 : i32
    %c0_i32_1 = arith.constant 0 : i32
    return %c0_i32, %c0_i32_0 : i32, i32
  }
  func.func @transform_2(%arg0: i32) -> (i32, i32) {
    %c0_i32 = arith.constant 0 : i32
    %c0_i32_0 = arith.constant 0 : i32
    %c0_i32_1 = arith.constant 0 : i32
    return %c0_i32, %c0_i32_0 : i32, i32
  }
  func.func @transform_3(%arg0: i32) -> (i32, i32) {
    %c0_i32 = arith.constant 0 : i32
    %c0_i32_0 = arith.constant 0 : i32
    %c0_i32_1 = arith.constant 0 : i32
    return %c0_i32, %c0_i32_0 : i32, i32
  }
  func.func @transform_4(%arg0: i32) -> (i32, i32) {
    %c0_i32 = arith.constant 0 : i32
    %c0_i32_0 = arith.constant 0 : i32
    %c0_i32_1 = arith.constant 0 : i32
    return %c0_i32, %c0_i32_0 : i32, i32
  }
  func.func @transform_5(%arg0: i32) -> (i32, i32) {
    %c0_i32 = arith.constant 0 : i32
    %c0_i32_0 = arith.constant 0 : i32
    %c0_i32_1 = arith.constant 0 : i32
    return %c0_i32, %c0_i32_0 : i32, i32
  }
  func.func @transform_6(%arg0: i32) -> (i32, i32) {
    %c0_i32 = arith.constant 0 : i32
    %c0_i32_0 = arith.constant 0 : i32
    %c0_i32_1 = arith.constant 0 : i32
    return %c0_i32, %c0_i32_0 : i32, i32
  }
  func.func @transform_7(%arg0: i32) -> (i32, i32) {
    %c0_i32 = arith.constant 0 : i32
    %c0_i32_0 = arith.constant 0 : i32
    %c0_i32_1 = arith.constant 0 : i32
    return %c0_i32, %c0_i32_0 : i32, i32
  }
  func.func @transform_8(%arg0: i32) -> (i32, i32) {
    %c0_i32 = arith.constant 0 : i32
    %c0_i32_0 = arith.constant 0 : i32
    return %arg0, %c0_i32 : i32, i32
  }
}

</mosaic_0001>

<llo_original>
// kernel: act_preprocess_net.1
$region0: #{act_preprocess_net.1}
  #allocation0 [shape = 'u32[]', space=smem, size = 0x4, offset = 0x4, fixed_abs, tag = 'smem constant byte address 0x4 - core index']
  #allocation1 [shape = 'u32[144,128]{1,0:T(1,128)}', space=vmem, size = 0x12000, scoped, tag = 'internal scratch']
  %s0 = inlined_call_operand.vmem [shape: f32[8,6], index: 0, kind: input, shape index: {}]
  %s1 = inlined_call_operand.vmem [shape: f32[6,32], index: 1, kind: input, shape index: {}]
  %s2 = inlined_call_operand.vmem [shape: f32[1,32], index: 2, kind: input, shape index: {}]
  %s3 = inlined_call_operand.vmem [shape: f32[32,64], index: 3, kind: input, shape index: {}]
  %s4 = inlined_call_operand.vmem [shape: f32[1,64], index: 4, kind: input, shape index: {}]
  %s5 = inlined_call_operand.vmem [shape: f32[64,64], index: 5, kind: input, shape index: {}]
  %s6 = inlined_call_operand.vmem [shape: f32[1,64], index: 6, kind: input, shape index: {}]
  %s7 = inlined_call_operand.vmem [shape: f32[64,128], index: 7, kind: input, shape index: {}]
  %s8 = inlined_call_operand.hbm [shape: f32[8,128], index: 8, kind: output, shape index: {}]
  %s9 = sld [smem:[#allocation0]]
  $region42: #{act_preprocess_net.1} parent=0
    _
  %s11 = ssub.s32 1, %s9
  %s12 = scalar_select 0, %s11, %s9
  $region1: #{act_preprocess_net.1} parent=0
    #allocation2 [shape = 'u8[4096]{0}', space=vmem, size = 0x1000, scoped, tag = 'output window, operand 0, single buffered']
    #allocation3 [shape = 's32[1]{0}', space=sflag, size = 0x4, scoped, tag = 'scoped memory for act_preprocess_net.1']
    %13 = vsyncpa [#allocation3], 0
    // Predicated region
    $region2: #{act_preprocess_net.1} parent=1 // pred_check
      _
    $region3: #{act_preprocess_net.1} parent=1 // pred_check_branch
      %15 = sbr.rel (0) target = $region5
    $region4: #{act_preprocess_net.1} parent=1 // pred_region
      _
    $region5: #{act_preprocess_net.1} parent=1 // pred_fallthru
      _
    // Predicated region
    $region6: #{act_preprocess_net.1} parent=1 // pred_check
      _
    $region7: #{act_preprocess_net.1} parent=1 // pred_check_branch
      %17 = sbr.rel (0) target = $region9
    $region8: #{act_preprocess_net.1} parent=1 // pred_region
      _
    $region9: #{act_preprocess_net.1} parent=1 // pred_fallthru
      _
    // Predicated region
    $region10: #{act_preprocess_net.1} parent=1 // pred_check
      _
    $region11: #{act_preprocess_net.1} parent=1 // pred_check_branch
      %19 = sbr.rel (0) target = $region13
    $region12: #{act_preprocess_net.1} parent=1 // pred_region
      _
    $region13: #{act_preprocess_net.1} parent=1 // pred_fallthru
      _
    // Predicated region
    $region14: #{act_preprocess_net.1} parent=1 // pred_check
      _
    $region15: #{act_preprocess_net.1} parent=1 // pred_check_branch
      %21 = sbr.rel (0) target = $region17
    $region16: #{act_preprocess_net.1} parent=1 // pred_region
      _
    $region17: #{act_preprocess_net.1} parent=1 // pred_fallthru
      _
    // Predicated region
    $region18: #{act_preprocess_net.1} parent=1 // pred_check
      _
    $region19: #{act_preprocess_net.1} parent=1 // pred_check_branch
      %23 = sbr.rel (0) target = $region21
    $region20: #{act_preprocess_net.1} parent=1 // pred_region
      _
    $region21: #{act_preprocess_net.1} parent=1 // pred_fallthru
      _
    // Predicated region
    $region22: #{act_preprocess_net.1} parent=1 // pred_check
      _
    $region23: #{act_preprocess_net.1} parent=1 // pred_check_branch
      %25 = sbr.rel (0) target = $region25
    $region24: #{act_preprocess_net.1} parent=1 // pred_region
      _
    $region25: #{act_preprocess_net.1} parent=1 // pred_fallthru
      _
    // Predicated region
    $region26: #{act_preprocess_net.1} parent=1 // pred_check
      _
    $region27: #{act_preprocess_net.1} parent=1 // pred_check_branch
      %27 = sbr.rel (0) target = $region29
    $region28: #{act_preprocess_net.1} parent=1 // pred_region
      _
    $region29: #{act_preprocess_net.1} parent=1 // pred_fallthru
      _
    // Predicated region
    $region30: #{act_preprocess_net.1} parent=1 // pred_check
      _
    $region31: #{act_preprocess_net.1} parent=1 // pred_check_branch
      %29 = sbr.rel (0) target = $region33
    $region32: #{act_preprocess_net.1} parent=1 // pred_region
      _
    $region33: #{act_preprocess_net.1} parent=1 // pred_fallthru
      _
    %v30 = vld [vmem:[%s0] sm:$0xff]
    %v31 = vld [vmem:[%s1] sm:$0x3f]
    %v32 = vld [vmem:[%s2] sm:$0x1]
    %v34 = vlaneseq
    %v35 = vshrl.u32 %v34, 7
    %v36 = vsub.s32 0, %v35
    %v37 = vrot.slane %v32, %v36
    %vm39 = vcmask 48128
    %v41 = vsel %vm39, %v30, 0
    %vm43 = vcmask 1045504
    %v45 = vsel %vm43, %v31, 0
    %47 = vmatprep.subr.mxu0 0.0
    %48 = vmatpush1.msra.mxu0 0.0
    %49 = vmatprep.subr.mxu0 0.0
    %50 = vmatpush1.msra.mxu0 0.0
    %51 = vmatprep.subr.mxu0 0.0
    %52 = vmatpush1.msra.mxu0 0.0
    %53 = vmatprep.subr.mxu0 0.0
    %54 = vmatpush1.msra.mxu0 0.0
    %55 = vmatprep.subr.mxu0 0.0
    %56 = vmatpush1.msra.mxu0 0.0
    %57 = vmatprep.subr.mxu0 0.0
    %58 = vmatpush1.msra.mxu0 0.0
    %59 = vmatprep.subr.mxu0 0.0
    %60 = vmatpush1.msra.mxu0 0.0
    %61 = vmatprep.subr.mxu0 0.0
    %62 = vmatpush1.msra.mxu0 0.0
    %63 = vmatprep.subr.mxu0 0.0
    %64 = vmatpush1.msra.mxu0 0.0
    %65 = vmatprep.subr.mxu0 0.0
    %66 = vmatpush1.msra.mxu0 0.0
    %67 = vmatprep.subr.mxu0 0.0
    %68 = vmatpush1.msra.mxu0 0.0
    %69 = vmatprep.subr.mxu0 0.0
    %70 = vmatpush1.msra.mxu0 0.0
    %71 = vmatprep.subr.mxu0 0.0
    %72 = vmatpush1.msra.mxu0 0.0
    %73 = vmatprep.subr.mxu0 0.0
    %74 = vmatpush1.msra.mxu0 0.0
    %75 = vmatprep.subr.mxu0 0.0
    %76 = vmatpush1.msra.mxu0 0.0
    %77 = vmatprep.subr.mxu0 0.0
    %78 = vmatpush1.msra.mxu0 %v45
    %79 = vmatprep.subr.mxu0 0.0
    %80 = vmatpush2.msra.mxu0 0.0
    %81 = vmatprep.subr.mxu0 0.0
    %82 = vmatpush2.msra.mxu0 0.0
    %83 = vmatprep.subr.mxu0 0.0
    %84 = vmatpush2.msra.mxu0 0.0
    %85 = vmatprep.subr.mxu0 0.0
    %86 = vmatpush2.msra.mxu0 0.0
    %87 = vmatprep.subr.mxu0 0.0
    %88 = vmatpush2.msra.mxu0 0.0
    %89 = vmatprep.subr.mxu0 0.0
    %90 = vmatpush2.msra.mxu0 0.0
    %91 = vmatprep.subr.mxu0 0.0
    %92 = vmatpush2.msra.mxu0 0.0
    %93 = vmatprep.subr.mxu0 0.0
    %94 = vmatpush2.msra.mxu0 0.0
    %95 = vmatprep.subr.mxu0 0.0
    %96 = vmatpush2.msra.mxu0 0.0
    %97 = vmatprep.subr.mxu0 0.0
    %98 = vmatpush2.msra.mxu0 0.0
    %99 = vmatprep.subr.mxu0 0.0
    %100 = vmatpush2.msra.mxu0 0.0
    %101 = vmatprep.subr.mxu0 0.0
    %102 = vmatpush2.msra.mxu0 0.0
    %103 = vmatprep.subr.mxu0 0.0
    %104 = vmatpush2.msra.mxu0 0.0
    %105 = vmatprep.subr.mxu0 0.0
    %106 = vmatpush2.msra.mxu0 0.0
    %107 = vmatprep.subr.mxu0 0.0
    %108 = vmatpush2.msra.mxu0 0.0
    %109 = vmatprep.subr.mxu0 0.0
    %110 = vmatpush2.msra.mxu0 0.0
    %111 = vmatprep.mubr.f32.mxu0 0.0
    %112 = vmatmul.mubr.f32.gmra.mxu0 %v41
    %v113 = vpop.f32.mrf.mxu0
    %v114 = vadd.f32 %v37, %v113
    %v115 = vpop.f32.mrf.mxu0
    %116 = vdwg.mxu0
    %v117 = vmax.f32 %v114, 0.0
    %v118 = vld [vmem:[%s3] sm:$0xff]
    %v119 = vld [vmem:[%s3 + $0x8] sm:$0xff]
    %v120 = vld [vmem:[%s3 + $0x10] sm:$0xff]
    %v121 = vld [vmem:[%s3 + $0x18] sm:$0xff]
    %v122 = vld [vmem:[%s4] sm:$0x1]
    %v124 = vlaneseq
    %v125 = vshrl.u32 %v124, 7
    %v126 = vsub.s32 0, %v125
    %v127 = vrot.slane %v122, %v126
    %vm129 = vcmask 261120
    %v131 = vsel %vm129, %v117, 0
    %133 = vmatprep.subr.mxu0 0.0
    %134 = vmatpush1.msra.mxu0 0.0
    %135 = vmatprep.subr.mxu0 0.0
    %136 = vmatpush1.msra.mxu0 0.0
    %137 = vmatprep.subr.mxu0 0.0
    %138 = vmatpush1.msra.mxu0 0.0
    %139 = vmatprep.subr.mxu0 0.0
    %140 = vmatpush1.msra.mxu0 0.0
    %141 = vmatprep.subr.mxu0 0.0
    %142 = vmatpush1.msra.mxu0 0.0
    %143 = vmatprep.subr.mxu0 0.0
    %144 = vmatpush1.msra.mxu0 0.0
    %145 = vmatprep.subr.mxu0 0.0
    %146 = vmatpush1.msra.mxu0 0.0
    %147 = vmatprep.subr.mxu0 0.0
    %148 = vmatpush1.msra.mxu0 0.0
    %149 = vmatprep.subr.mxu0 0.0
    %150 = vmatpush1.msra.mxu0 0.0
    %151 = vmatprep.subr.mxu0 0.0
    %152 = vmatpush1.msra.mxu0 0.0
    %153 = vmatprep.subr.mxu0 0.0
    %154 = vmatpush1.msra.mxu0 0.0
    %155 = vmatprep.subr.mxu0 0.0
    %156 = vmatpush1.msra.mxu0 0.0
    %157 = vmatprep.subr.mxu0 0.0
    %158 = vmatpush1.msra.mxu0 %v121
    %159 = vmatprep.subr.mxu0 0.0
    %160 = vmatpush1.msra.mxu0 %v120
    %161 = vmatprep.subr.mxu0 0.0
    %162 = vmatpush1.msra.mxu0 %v119
    %163 = vmatprep.subr.mxu0 0.0
    %164 = vmatpush1.msra.mxu0 %v118
    %165 = vmatprep.subr.mxu0 0.0
    %166 = vmatpush2.msra.mxu0 0.0
    %167 = vmatprep.subr.mxu0 0.0
    %168 = vmatpush2.msra.mxu0 0.0
    %169 = vmatprep.subr.mxu0 0.0
    %170 = vmatpush2.msra.mxu0 0.0
    %171 = vmatprep.subr.mxu0 0.0
    %172 = vmatpush2.msra.mxu0 0.0
    %173 = vmatprep.subr.mxu0 0.0
    %174 = vmatpush2.msra.mxu0 0.0
    %175 = vmatprep.subr.mxu0 0.0
    %176 = vmatpush2.msra.mxu0 0.0
    %177 = vmatprep.subr.mxu0 0.0
    %178 = vmatpush2.msra.mxu0 0.0
    %179 = vmatprep.subr.mxu0 0.0
    %180 = vmatpush2.msra.mxu0 0.0
    %181 = vmatprep.subr.mxu0 0.0
    %182 = vmatpush2.msra.mxu0 0.0
    %183 = vmatprep.subr.mxu0 0.0
    %184 = vmatpush2.msra.mxu0 0.0
    %185 = vmatprep.subr.mxu0 0.0
    %186 = vmatpush2.msra.mxu0 0.0
    %187 = vmatprep.subr.mxu0 0.0
    %188 = vmatpush2.msra.mxu0 0.0
    %189 = vmatprep.subr.mxu0 0.0
    %190 = vmatpush2.msra.mxu0 0.0
    %191 = vmatprep.subr.mxu0 0.0
    %192 = vmatpush2.msra.mxu0 0.0
    %193 = vmatprep.subr.mxu0 0.0
    %194 = vmatpush2.msra.mxu0 0.0
    %195 = vmatprep.subr.mxu0 0.0
    %196 = vmatpush2.msra.mxu0 0.0
    %197 = vmatprep.mubr.f32.mxu0 0.0
    %198 = vmatmul.mubr.f32.gmra.mxu0 %v131
    %v199 = vpop.f32.mrf.mxu0
    %v200 = vadd.f32 %v127, %v199
    %v201 = vpop.f32.mrf.mxu0
    %202 = vdwg.mxu0
    %v203 = vmax.f32 %v200, 0.0
    %v204 = vld [vmem:[%s5] sm:$0xff]
    %v205 = vld [vmem:[%s5 + $0x8] sm:$0xff]
    %v206 = vld [vmem:[%s5 + $0x10] sm:$0xff]
    %v207 = vld [vmem:[%s5 + $0x18] sm:$0xff]
    %v208 = vld [vmem:[%s5 + $0x20] sm:$0xff]
    %v209 = vld [vmem:[%s5 + $0x28] sm:$0xff]
    %v210 = vld [vmem:[%s5 + $0x30] sm:$0xff]
    %v211 = vld [vmem:[%s5 + $0x38] sm:$0xff]
    %v212 = vld [vmem:[%s6] sm:$0x1]
    %v214 = vlaneseq
    %v215 = vshrl.u32 %v214, 7
    %v216 = vsub.s32 0, %v215
    %v217 = vrot.slane %v212, %v216
    %vm219 = vcmask 523264
    %v221 = vsel %vm219, %v203, 0
    %223 = vmatprep.subr.mxu0 0.0
    %224 = vmatpush1.msra.mxu0 0.0
    %225 = vmatprep.subr.mxu0 0.0
    %226 = vmatpush1.msra.mxu0 0.0
    %227 = vmatprep.subr.mxu0 0.0
    %228 = vmatpush1.msra.mxu0 0.0
    %229 = vmatprep.subr.mxu0 0.0
    %230 = vmatpush1.msra.mxu0 0.0
    %231 = vmatprep.subr.mxu0 0.0
    %232 = vmatpush1.msra.mxu0 0.0
    %233 = vmatprep.subr.mxu0 0.0
    %234 = vmatpush1.msra.mxu0 0.0
    %235 = vmatprep.subr.mxu0 0.0
    %236 = vmatpush1.msra.mxu0 0.0
    %237 = vmatprep.subr.mxu0 0.0
    %238 = vmatpush1.msra.mxu0 0.0
    %239 = vmatprep.subr.mxu0 0.0
    %240 = vmatpush1.msra.mxu0 %v211
    %241 = vmatprep.subr.mxu0 0.0
    %242 = vmatpush1.msra.mxu0 %v210
    %243 = vmatprep.subr.mxu0 0.0
    %244 = vmatpush1.msra.mxu0 %v209
    %245 = vmatprep.subr.mxu0 0.0
    %246 = vmatpush1.msra.mxu0 %v208
    %247 = vmatprep.subr.mxu0 0.0
    %248 = vmatpush1.msra.mxu0 %v207
    %249 = vmatprep.subr.mxu0 0.0
    %250 = vmatpush1.msra.mxu0 %v206
    %251 = vmatprep.subr.mxu0 0.0
    %252 = vmatpush1.msra.mxu0 %v205
    %253 = vmatprep.subr.mxu0 0.0
    %254 = vmatpush1.msra.mxu0 %v204
    %255 = vmatprep.subr.mxu0 0.0
    %256 = vmatpush2.msra.mxu0 0.0
    %257 = vmatprep.subr.mxu0 0.0
    %258 = vmatpush2.msra.mxu0 0.0
    %259 = vmatprep.subr.mxu0 0.0
    %260 = vmatpush2.msra.mxu0 0.0
    %261 = vmatprep.subr.mxu0 0.0
    %262 = vmatpush2.msra.mxu0 0.0
    %263 = vmatprep.subr.mxu0 0.0
    %264 = vmatpush2.msra.mxu0 0.0
    %265 = vmatprep.subr.mxu0 0.0
    %266 = vmatpush2.msra.mxu0 0.0
    %267 = vmatprep.subr.mxu0 0.0
    %268 = vmatpush2.msra.mxu0 0.0
    %269 = vmatprep.subr.mxu0 0.0
    %270 = vmatpush2.msra.mxu0 0.0
    %271 = vmatprep.subr.mxu0 0.0
    %272 = vmatpush2.msra.mxu0 0.0
    %273 = vmatprep.subr.mxu0 0.0
    %274 = vmatpush2.msra.mxu0 0.0
    %275 = vmatprep.subr.mxu0 0.0
    %276 = vmatpush2.msra.mxu0 0.0
    %277 = vmatprep.subr.mxu0 0.0
    %278 = vmatpush2.msra.mxu0 0.0
    %279 = vmatprep.subr.mxu0 0.0
    %280 = vmatpush2.msra.mxu0 0.0
    %281 = vmatprep.subr.mxu0 0.0
    %282 = vmatpush2.msra.mxu0 0.0
    %283 = vmatprep.subr.mxu0 0.0
    %284 = vmatpush2.msra.mxu0 0.0
    %285 = vmatprep.subr.mxu0 0.0
    %286 = vmatpush2.msra.mxu0 0.0
    %287 = vmatprep.mubr.f32.mxu0 0.0
    %288 = vmatmul.mubr.f32.gmra.mxu0 %v221
    %v289 = vpop.f32.mrf.mxu0
    %v290 = vadd.f32 %v217, %v289
    %v291 = vpop.f32.mrf.mxu0
    %292 = vdwg.mxu0
    %v293 = vmax.f32 %v290, 0.0
    %v294 = vld [vmem:[%s7] sm:$0xff]
    %v295 = vld [vmem:[%s7 + $0x8] sm:$0xff]
    %v296 = vld [vmem:[%s7 + $0x10] sm:$0xff]
    %v297 = vld [vmem:[%s7 + $0x18] sm:$0xff]
    %v298 = vld [vmem:[%s7 + $0x20] sm:$0xff]
    %v299 = vld [vmem:[%s7 + $0x28] sm:$0xff]
    %v300 = vld [vmem:[%s7 + $0x30] sm:$0xff]
    %v301 = vld [vmem:[%s7 + $0x38] sm:$0xff]
    %v303 = vsel %vm219, %v293, 0
    %305 = vmatprep.subr.mxu0 0.0
    %306 = vmatpush1.msra.mxu0 0.0
    %307 = vmatprep.subr.mxu0 0.0
    %308 = vmatpush1.msra.mxu0 0.0
    %309 = vmatprep.subr.mxu0 0.0
    %310 = vmatpush1.msra.mxu0 0.0
    %311 = vmatprep.subr.mxu0 0.0
    %312 = vmatpush1.msra.mxu0 0.0
    %313 = vmatprep.subr.mxu0 0.0
    %314 = vmatpush1.msra.mxu0 0.0
    %315 = vmatprep.subr.mxu0 0.0
    %316 = vmatpush1.msra.mxu0 0.0
    %317 = vmatprep.subr.mxu0 0.0
    %318 = vmatpush1.msra.mxu0 0.0
    %319 = vmatprep.subr.mxu0 0.0
    %320 = vmatpush1.msra.mxu0 0.0
    %321 = vmatprep.subr.mxu0 0.0
    %322 = vmatpush1.msra.mxu0 %v301
    %323 = vmatprep.subr.mxu0 0.0
    %324 = vmatpush1.msra.mxu0 %v300
    %325 = vmatprep.subr.mxu0 0.0
    %326 = vmatpush1.msra.mxu0 %v299
    %327 = vmatprep.subr.mxu0 0.0
    %328 = vmatpush1.msra.mxu0 %v298
    %329 = vmatprep.subr.mxu0 0.0
    %330 = vmatpush1.msra.mxu0 %v297
    %331 = vmatprep.subr.mxu0 0.0
    %332 = vmatpush1.msra.mxu0 %v296
    %333 = vmatprep.subr.mxu0 0.0
    %334 = vmatpush1.msra.mxu0 %v295
    %335 = vmatprep.subr.mxu0 0.0
    %336 = vmatpush1.msra.mxu0 %v294
    %337 = vmatprep.subr.mxu0 0.0
    %338 = vmatpush2.msra.mxu0 0.0
    %339 = vmatprep.subr.mxu0 0.0
    %340 = vmatpush2.msra.mxu0 0.0
    %341 = vmatprep.subr.mxu0 0.0
    %342 = vmatpush2.msra.mxu0 0.0
    %343 = vmatprep.subr.mxu0 0.0
    %344 = vmatpush2.msra.mxu0 0.0
    %345 = vmatprep.subr.mxu0 0.0
    %346 = vmatpush2.msra.mxu0 0.0
    %347 = vmatprep.subr.mxu0 0.0
    %348 = vmatpush2.msra.mxu0 0.0
    %349 = vmatprep.subr.mxu0 0.0
    %350 = vmatpush2.msra.mxu0 0.0
    %351 = vmatprep.subr.mxu0 0.0
    %352 = vmatpush2.msra.mxu0 0.0
    %353 = vmatprep.subr.mxu0 0.0
    %354 = vmatpush2.msra.mxu0 0.0
    %355 = vmatprep.subr.mxu0 0.0
    %356 = vmatpush2.msra.mxu0 0.0
    %357 = vmatprep.subr.mxu0 0.0
    %358 = vmatpush2.msra.mxu0 0.0
    %359 = vmatprep.subr.mxu0 0.0
    %360 = vmatpush2.msra.mxu0 0.0
    %361 = vmatprep.subr.mxu0 0.0
    %362 = vmatpush2.msra.mxu0 0.0
    %363 = vmatprep.subr.mxu0 0.0
    %364 = vmatpush2.msra.mxu0 0.0
    %365 = vmatprep.subr.mxu0 0.0
    %366 = vmatpush2.msra.mxu0 0.0
    %367 = vmatprep.subr.mxu0 0.0
    %368 = vmatpush2.msra.mxu0 0.0
    %369 = vmatprep.mubr.f32.mxu0 0.0
    %370 = vmatmul.mubr.f32.gmra.mxu0 %v303
    %v371 = vpop.f32.mrf.mxu0
    %v372 = vadd.f32 0.0, %v371
    %v373 = vpop.f32.mrf.mxu0
    %374 = vdwg.mxu0
    %375 = vst [vmem:[#allocation2] sm:$0xff] %v372
    // Predicated region
    $region34: #{act_preprocess_net.1} parent=1 // pred_check
      _
    $region35: #{act_preprocess_net.1} parent=1 // pred_check_branch
      %377 = sbr.rel (0) target = $region37
    $region36: #{act_preprocess_net.1} parent=1 // pred_region
      %s379 = ssub.s32 128, 128
      %380 = vsyncadd [#allocation3], %s379
      %s382 = sshll.u32 [#allocation2], 4
      %s383 = int_to_ptr.vmem [resolvable:$true] %s382
      %385 = dma.vmem_to_hbm [thread:$0]  %s383, 128, %s8, [#allocation3]
    $region37: #{act_preprocess_net.1} parent=1 // pred_fallthru
      _
    // Predicated region
    $region38: #{act_preprocess_net.1} parent=1 // pred_check
      _
    $region39: #{act_preprocess_net.1} parent=1 // pred_check_branch
      %387 = sbr.rel (0) target = $region41
    $region40: #{act_preprocess_net.1} parent=1 // pred_region
      %388 = dma.done [#allocation3], 128
    $region41: #{act_preprocess_net.1} parent=1 // pred_fallthru
      _
    %389 = vsyncpa [#allocation3], 1

</llo_original>
